<compile_context>
chip_gen: v5e
topology: v5e:2x2
jax: 0.10.0
libtpu: 0.0.40
codegen_flags: <defaults>
</compile_context>

<pallas_src>
import jax
import jax.numpy as jnp
from jax.experimental import pallas as pl
from jax.experimental.pallas import tpu as pltpu

_LANE = 128
_SUBLANE = 8


def _round_up(x, m):
    return ((x + m - 1) // m) * m


def _mlp_kernel(x1_ref, x2_ref, w1a_ref, w1b_ref, b1_ref,
                w2_ref, b2_ref, w3_ref, b3_ref, o_ref):
    # fc1 with the concat fused as split-K: two bf16 MXU passes, f32 accumulate.
    acc1 = jnp.dot(x1_ref[...], w1a_ref[...], preferred_element_type=jnp.float32)
    acc1 = acc1 + jnp.dot(x2_ref[...], w1b_ref[...],
                          preferred_element_type=jnp.float32)
    h1 = jnp.tanh(acc1 + b1_ref[...])                      # f32 tanh (EUP)

    # fc2 + relu (bf16 MXU inputs, f32 accumulate / elementwise).
    h2 = jnp.dot(h1.astype(jnp.bfloat16), w2_ref[...],
                 preferred_element_type=jnp.float32) + b2_ref[...]
    h2 = jnp.maximum(h2, 0.0)

    # fc3 into the lane-dense padded output.
    out = jnp.dot(h2.astype(jnp.bfloat16), w3_ref[...],
                  preferred_element_type=jnp.float32) + b3_ref[...]
    o_ref[...] = out.astype(o_ref.dtype)


def affinity_merge_extra_tanh(x1, x2, params, *, block_b=1024):
    """Forward pass of AffinityMergeLayer_extra_tanh.

    x1: (B, dim1), x2: (B, dim2). Returns (B, dim4) in float32.
    params: dict with w1/w2/w3 stored as (in, out) and b1/b2/b3 as (1, out).
    """
    B, dim1 = x1.shape
    _, dim2 = x2.shape
    w1, w2, w3 = params["w1"], params["w2"], params["w3"]
    b1, b2, b3 = params["b1"], params["b2"], params["b3"]
    h1 = w1.shape[1]
    h2 = w2.shape[1]
    dim4 = w3.shape[1]

    # Lane-dense output feature dim (avoid masked partial stores on dim4 < 128).
    out_pad = _round_up(dim4, _LANE)

    # Batch tile: sublane-aligned, capped at block_b (v7x 64 MiB VMEM safe:
    # TB=1024 -> ~1.5 MiB of double-buffered tiles + intermediates).
    b_pad8 = _round_up(B, _SUBLANE)
    tb = min(block_b, b_pad8)
    grid_b = pl.cdiv(b_pad8, tb)
    b_pad = grid_b * tb

    # bf16 MXU operands; biases stay f32 for the post-accumulation adds.
    x1p = x1.astype(jnp.bfloat16)
    x2p = x2.astype(jnp.bfloat16)
    if b_pad != B:
        x1p = jnp.pad(x1p, ((0, b_pad - B), (0, 0)))
        x2p = jnp.pad(x2p, ((0, b_pad - B), (0, 0)))

    w1a = w1[:dim1].astype(jnp.bfloat16)          # split-K halves of fc1
    w1b = w1[dim1:].astype(jnp.bfloat16)
    w2b = w2.astype(jnp.bfloat16)
    w3b = jnp.zeros((h2, out_pad), jnp.bfloat16).at[:, :dim4].set(
        w3.astype(jnp.bfloat16))
    b1p = b1.astype(jnp.float32)
    b2p = b2.astype(jnp.float32)
    b3p = jnp.zeros((1, out_pad), jnp.float32).at[:, :dim4].set(
        b3.astype(jnp.float32))

    flops = 2 * b_pad * ((dim1 + dim2) * h1 + h1 * h2 + h2 * out_pad)
    transcendentals = b_pad * h1  # tanh
    bytes_accessed = (
        x1p.size * 2 + x2p.size * 2                                   # bf16 acts
        + (w1a.size + w1b.size + w2b.size + w3b.size) * 2             # bf16 wts
        + (b1p.size + b2p.size + b3p.size) * 4                        # f32 biases
        + b_pad * out_pad * 4                                         # f32 out
    )

    out = pl.pallas_call(
        _mlp_kernel,
        out_shape=jax.ShapeDtypeStruct((b_pad, out_pad), jnp.float32),
        grid=(grid_b,),
        in_specs=[
            pl.BlockSpec((tb, dim1), lambda i: (i, 0)),      # x1 tile (pipelined)
            pl.BlockSpec((tb, dim2), lambda i: (i, 0)),      # x2 tile (pipelined)
            pl.BlockSpec((dim1, h1), lambda i: (0, 0)),      # w1a  (VMEM-resident)
            pl.BlockSpec((dim2, h1), lambda i: (0, 0)),      # w1b
            pl.BlockSpec((1, h1), lambda i: (0, 0)),         # b1
            pl.BlockSpec((h1, h2), lambda i: (0, 0)),        # w2
            pl.BlockSpec((1, h2), lambda i: (0, 0)),         # b2
            pl.BlockSpec((h2, out_pad), lambda i: (0, 0)),   # w3 (lane-padded)
            pl.BlockSpec((1, out_pad), lambda i: (0, 0)),    # b3 (lane-padded)
        ],
        out_specs=pl.BlockSpec((tb, out_pad), lambda i: (i, 0)),
        compiler_params=pltpu.CompilerParams(
            dimension_semantics=("parallel",),
            vmem_limit_bytes=64 << 20,
        ),
        cost_estimate=pl.CostEstimate(
            flops=flops,
            transcendentals=transcendentals,
            bytes_accessed=bytes_accessed,
        ),
    )(x1p, x2p, w1a, w1b, b1p, w2b, b2p, w3b, b3p)

    return out[:B, :dim4]


def init_params(key, dim1, dim2, dim3, dim4):
    """Deterministic parameter init mirroring the PyTorch module's __init__.

    fc1/fc2 weights: xavier_normal. fc3 weight + all biases: PyTorch Linear
    default U(-1/sqrt(fan_in), 1/sqrt(fan_in)). Weights stored as (in, out);
    weights kept in bf16 (MXU-native), biases in f32.
    """
    d_in1 = dim1 + dim2
    h1 = dim3 * 8
    h2 = dim3 * 2
    k1, k2, k3, kb1, kb2, kb3 = jax.random.split(key, 6)

    def xavier_normal(k, fan_in, fan_out):
        std = (2.0 / (fan_in + fan_out)) ** 0.5
        return std * jax.random.normal(k, (fan_in, fan_out), dtype=jnp.float32)

    def torch_default_uniform(k, fan_in, shape):
        bound = 1.0 / (fan_in ** 0.5)
        return jax.random.uniform(k, shape, jnp.float32, -bound, bound)

    return {
        "w1": xavier_normal(k1, d_in1, h1).astype(jnp.bfloat16),
        "b1": torch_default_uniform(kb1, d_in1, (1, h1)),
        "w2": xavier_normal(k2, h1, h2).astype(jnp.bfloat16),
        "b2": torch_default_uniform(kb2, h1, (1, h2)),
        "w3": torch_default_uniform(k3, h2, (h2, dim4)).astype(jnp.bfloat16),
        "b3": torch_default_uniform(kb3, h2, (1, dim4)),
    }


if __name__ == "__main__":
    # Small shapes consistent with the module's forward: x1 (B, dim1), x2 (B, dim2).
    B, dim1, dim2, dim3, dim4 = 8, 16, 16, 16, 8

    key = jax.random.PRNGKey(0)
    kp, kx1, kx2 = jax.random.split(key, 3)

    params = init_params(kp, dim1, dim2, dim3, dim4)
    x1 = jax.random.normal(kx1, (B, dim1), dtype=jnp.float32)
    x2 = jax.random.normal(kx2, (B, dim2), dtype=jnp.float32)

    fwd = jax.jit(affinity_merge_extra_tanh)
    out = fwd(x1, x2, params)
    out = jax.block_until_ready(out)

    # Pure-JAX f32 reference (bf16 MXU inputs in the kernel -> loose tolerance).
    w1 = params["w1"].astype(jnp.float32)
    w2 = params["w2"].astype(jnp.float32)
    w3 = params["w3"].astype(jnp.float32)
    x = jnp.concatenate([x1, x2], axis=1)
    r1 = jnp.tanh(x @ w1 + params["b1"])
    r2 = jnp.maximum(r1 @ w2 + params["b2"], 0.0)
    ref = r2 @ w3 + params["b3"]

    assert out.shape == (B, dim4)
    assert jnp.allclose(out, ref, atol=2e-2, rtol=2e-2), (
        f"max abs err {jnp.max(jnp.abs(out - ref))}")

    print("KERNEL_OK")
</pallas_src>

<mosaic_0001>
module attributes {stable_mosaic.version = 11 : i64} {
  func.func @_mlp_kernel(%arg0: i32, %arg1: memref<8x16xbf16, #tpu.memory_space<vmem>>, %arg2: memref<8x16xbf16, #tpu.memory_space<vmem>>, %arg3: memref<16x128xbf16, #tpu.memory_space<vmem>>, %arg4: memref<16x128xbf16, #tpu.memory_space<vmem>>, %arg5: memref<1x128xf32, #tpu.memory_space<vmem>>, %arg6: memref<128x32xbf16, #tpu.memory_space<vmem>>, %arg7: memref<1x32xf32, #tpu.memory_space<vmem>>, %arg8: memref<32x128xbf16, #tpu.memory_space<vmem>>, %arg9: memref<1x128xf32, #tpu.memory_space<vmem>>, %arg10: memref<8x128xf32, #tpu.memory_space<vmem>>) attributes {dimension_semantics = [#tpu.dimension_semantics<parallel>], iteration_bounds = array<i64: 1>, scalar_prefetch = 0 : i64, scratch_operands = 0 : i64, tpu.core_type = #tpu.core_type<tc>, window_params = [{transform_indices = @transform_0, window_bounds = array<i64: 8, 16>}, {transform_indices = @transform_1, window_bounds = array<i64: 8, 16>}, {pipeline_mode = #tpu.pipeline_mode<synchronous>, transform_indices = @transform_2, window_bounds = array<i64: 16, 128>}, {pipeline_mode = #tpu.pipeline_mode<synchronous>, transform_indices = @transform_3, window_bounds = array<i64: 16, 128>}, {pipeline_mode = #tpu.pipeline_mode<synchronous>, transform_indices = @transform_4, window_bounds = array<i64: 1, 128>}, {pipeline_mode = #tpu.pipeline_mode<synchronous>, transform_indices = @transform_5, window_bounds = array<i64: 128, 32>}, {pipeline_mode = #tpu.pipeline_mode<synchronous>, transform_indices = @transform_6, window_bounds = array<i64: 1, 32>}, {pipeline_mode = #tpu.pipeline_mode<synchronous>, transform_indices = @transform_7, window_bounds = array<i64: 32, 128>}, {pipeline_mode = #tpu.pipeline_mode<synchronous>, transform_indices = @transform_8, window_bounds = array<i64: 1, 128>}, {transform_indices = @transform_9, window_bounds = array<i64: 8, 128>}]} {
    %c0 = arith.constant 0 : index
    %c0_0 = arith.constant 0 : index
    %0 = vector.load %arg1[%c0, %c0_0] : memref<8x16xbf16, #tpu.memory_space<vmem>>, vector<8x16xbf16>
    %c0_1 = arith.constant 0 : index
    %c0_2 = arith.constant 0 : index
    %1 = vector.load %arg3[%c0_1, %c0_2] : memref<16x128xbf16, #tpu.memory_space<vmem>>, vector<16x128xbf16>
    %cst = arith.constant dense<0.000000e+00> : vector<8x128xf32>
    %2 = tpu.matmul %0, %1, %cst {dimension_numbers = #tpu.dot_dimension_numbers<[1], [0], [0], [1], [0, 0, 1, 1], [], []>} : vector<8x16xbf16>, vector<16x128xbf16>, vector<8x128xf32> -> vector<8x128xf32>
    %c0_3 = arith.constant 0 : index
    %c0_4 = arith.constant 0 : index
    %3 = vector.load %arg2[%c0_3, %c0_4] : memref<8x16xbf16, #tpu.memory_space<vmem>>, vector<8x16xbf16>
    %c0_5 = arith.constant 0 : index
    %c0_6 = arith.constant 0 : index
    %4 = vector.load %arg4[%c0_5, %c0_6] : memref<16x128xbf16, #tpu.memory_space<vmem>>, vector<16x128xbf16>
    %cst_7 = arith.constant dense<0.000000e+00> : vector<8x128xf32>
    %5 = tpu.matmul %3, %4, %cst_7 {dimension_numbers = #tpu.dot_dimension_numbers<[1], [0], [0], [1], [0, 0, 1, 1], [], []>} : vector<8x16xbf16>, vector<16x128xbf16>, vector<8x128xf32> -> vector<8x128xf32>
    %6 = arith.addf %2, %5 : vector<8x128xf32>
    %c0_8 = arith.constant 0 : index
    %c0_9 = arith.constant 0 : index
    %7 = vector.load %arg5[%c0_8, %c0_9] : memref<1x128xf32, #tpu.memory_space<vmem>>, vector<1x128xf32>
    %8 = vector.broadcast %7 : vector<1x128xf32> to vector<8x128xf32>
    %9 = arith.addf %6, %8 : vector<8x128xf32>
    %10 = math.tanh %9 : vector<8x128xf32>
    %11 = arith.truncf %10 : vector<8x128xf32> to vector<8x128xbf16>
    %c0_10 = arith.constant 0 : index
    %c0_11 = arith.constant 0 : index
    %12 = vector.load %arg6[%c0_10, %c0_11] : memref<128x32xbf16, #tpu.memory_space<vmem>>, vector<128x32xbf16>
    %cst_12 = arith.constant dense<0.000000e+00> : vector<8x32xf32>
    %13 = tpu.matmul %11, %12, %cst_12 {dimension_numbers = #tpu.dot_dimension_numbers<[1], [0], [0], [1], [0, 0, 1, 1], [], []>} : vector<8x128xbf16>, vector<128x32xbf16>, vector<8x32xf32> -> vector<8x32xf32>
    %c0_13 = arith.constant 0 : index
    %c0_14 = arith.constant 0 : index
    %14 = vector.load %arg7[%c0_13, %c0_14] : memref<1x32xf32, #tpu.memory_space<vmem>>, vector<1x32xf32>
    %15 = vector.broadcast %14 : vector<1x32xf32> to vector<8x32xf32>
    %16 = arith.addf %13, %15 : vector<8x32xf32>
    %cst_15 = arith.constant 0.000000e+00 : f32
    %17 = vector.broadcast %cst_15 : f32 to vector<8x32xf32>
    %18 = arith.maximumf %16, %17 : vector<8x32xf32>
    %19 = arith.truncf %18 : vector<8x32xf32> to vector<8x32xbf16>
    %c0_16 = arith.constant 0 : index
    %c0_17 = arith.constant 0 : index
    %20 = vector.load %arg8[%c0_16, %c0_17] : memref<32x128xbf16, #tpu.memory_space<vmem>>, vector<32x128xbf16>
    %cst_18 = arith.constant dense<0.000000e+00> : vector<8x128xf32>
    %21 = tpu.matmul %19, %20, %cst_18 {dimension_numbers = #tpu.dot_dimension_numbers<[1], [0], [0], [1], [0, 0, 1, 1], [], []>} : vector<8x32xbf16>, vector<32x128xbf16>, vector<8x128xf32> -> vector<8x128xf32>
    %c0_19 = arith.constant 0 : index
    %c0_20 = arith.constant 0 : index
    %22 = vector.load %arg9[%c0_19, %c0_20] : memref<1x128xf32, #tpu.memory_space<vmem>>, vector<1x128xf32>
    %23 = vector.broadcast %22 : vector<1x128xf32> to vector<8x128xf32>
    %24 = arith.addf %21, %23 : vector<8x128xf32>
    %c0_21 = arith.constant 0 : index
    %c0_22 = arith.constant 0 : index
    %25 = vector.load %arg10[%c0_21, %c0_22] : memref<8x128xf32, #tpu.memory_space<vmem>>, vector<8x128xf32>
    tpu.vector_store %arg10[%c0_21, %c0_22], %24 {strides = array<i32>} : memref<8x128xf32, #tpu.memory_space<vmem>>, vector<8x128xf32>,
    return
  }
  func.func @transform_0(%arg0: i32) -> (i32, i32) {
    %c0_i32 = arith.constant 0 : i32
    %c0_i32_0 = arith.constant 0 : i32
    return %arg0, %c0_i32 : i32, i32
  }
  func.func @transform_1(%arg0: i32) -> (i32, i32) {
    %c0_i32 = arith.constant 0 : i32
    %c0_i32_0 = arith.constant 0 : i32
    return %arg0, %c0_i32 : i32, i32
  }
  func.func @transform_2(%arg0: i32) -> (i32, i32) {
    %c0_i32 = arith.constant 0 : i32
    %c0_i32_0 = arith.constant 0 : i32
    %c0_i32_1 = arith.constant 0 : i32
    return %c0_i32, %c0_i32_0 : i32, i32
  }
  func.func @transform_3(%arg0: i32) -> (i32, i32) {
    %c0_i32 = arith.constant 0 : i32
    %c0_i32_0 = arith.constant 0 : i32
    %c0_i32_1 = arith.constant 0 : i32
    return %c0_i32, %c0_i32_0 : i32, i32
  }
  func.func @transform_4(%arg0: i32) -> (i32, i32) {
    %c0_i32 = arith.constant 0 : i32
    %c0_i32_0 = arith.constant 0 : i32
    %c0_i32_1 = arith.constant 0 : i32
    return %c0_i32, %c0_i32_0 : i32, i32
  }
  func.func @transform_5(%arg0: i32) -> (i32, i32) {
    %c0_i32 = arith.constant 0 : i32
    %c0_i32_0 = arith.constant 0 : i32
    %c0_i32_1 = arith.constant 0 : i32
    return %c0_i32, %c0_i32_0 : i32, i32
  }
  func.func @transform_6(%arg0: i32) -> (i32, i32) {
    %c0_i32 = arith.constant 0 : i32
    %c0_i32_0 = arith.constant 0 : i32
    %c0_i32_1 = arith.constant 0 : i32
    return %c0_i32, %c0_i32_0 : i32, i32
  }
  func.func @transform_7(%arg0: i32) -> (i32, i32) {
    %c0_i32 = arith.constant 0 : i32
    %c0_i32_0 = arith.constant 0 : i32
    %c0_i32_1 = arith.constant 0 : i32
    return %c0_i32, %c0_i32_0 : i32, i32
  }
  func.func @transform_8(%arg0: i32) -> (i32, i32) {
    %c0_i32 = arith.constant 0 : i32
    %c0_i32_0 = arith.constant 0 : i32
    %c0_i32_1 = arith.constant 0 : i32
    return %c0_i32, %c0_i32_0 : i32, i32
  }
  func.func @transform_9(%arg0: i32) -> (i32, i32) {
    %c0_i32 = arith.constant 0 : i32
    %c0_i32_0 = arith.constant 0 : i32
    return %arg0, %c0_i32 : i32, i32
  }
}

</mosaic_0001>

<llo_original>
// kernel: affinity_merge_extra_tanh.1
$region0: #{affinity_merge_extra_tanh.1}
  #allocation0 [shape = 'u32[]', space=smem, size = 0x4, offset = 0x4, fixed_abs, tag = 'smem constant byte address 0x4 - core index']
  #allocation1 [shape = 'u32[72,128]{1,0:T(1,128)}', space=vmem, size = 0x9000, scoped, tag = 'internal scratch']
  %s0 = inlined_call_operand.vmem [shape: bf16[8,16], index: 0, kind: input, shape index: {}]
  %s1 = inlined_call_operand.vmem [shape: bf16[8,16], index: 1, kind: input, shape index: {}]
  %s2 = inlined_call_operand.vmem [shape: bf16[16,128], index: 2, kind: input, shape index: {}]
  %s3 = inlined_call_operand.vmem [shape: bf16[16,128], index: 3, kind: input, shape index: {}]
  %s4 = inlined_call_operand.vmem [shape: f32[1,128], index: 4, kind: input, shape index: {}]
  %s5 = inlined_call_operand.vmem [shape: bf16[128,32], index: 5, kind: input, shape index: {}]
  %s6 = inlined_call_operand.vmem [shape: f32[1,32], index: 6, kind: input, shape index: {}]
  %s7 = inlined_call_operand.vmem [shape: bf16[32,128], index: 7, kind: input, shape index: {}]
  %s8 = inlined_call_operand.vmem [shape: f32[1,128], index: 8, kind: input, shape index: {}]
  %s9 = inlined_call_operand.hbm [shape: f32[8,128], index: 9, kind: output, shape index: {}]
  %s10 = sld [smem:[#allocation0]]
  $region46: #{affinity_merge_extra_tanh.1} parent=0
    _
  %s12 = ssub.s32 1, %s10
  %s13 = scalar_select 0, %s12, %s10
  $region1: #{affinity_merge_extra_tanh.1} parent=0
    #allocation2 [shape = 'u8[4096]{0}', space=vmem, size = 0x1000, scoped, tag = 'output window, operand 0, single buffered']
    #allocation3 [shape = 's32[1]{0}', space=sflag, size = 0x4, scoped, tag = 'scoped memory for affinity_merge_extra_tanh.1']
    %14 = vsyncpa [#allocation3], 0
    // Predicated region
    $region2: #{affinity_merge_extra_tanh.1} parent=1 // pred_check
      _
    $region3: #{affinity_merge_extra_tanh.1} parent=1 // pred_check_branch
      %16 = sbr.rel (0) target = $region5
    $region4: #{affinity_merge_extra_tanh.1} parent=1 // pred_region
      _
    $region5: #{affinity_merge_extra_tanh.1} parent=1 // pred_fallthru
      _
    // Predicated region
    $region6: #{affinity_merge_extra_tanh.1} parent=1 // pred_check
      _
    $region7: #{affinity_merge_extra_tanh.1} parent=1 // pred_check_branch
      %18 = sbr.rel (0) target = $region9
    $region8: #{affinity_merge_extra_tanh.1} parent=1 // pred_region
      _
    $region9: #{affinity_merge_extra_tanh.1} parent=1 // pred_fallthru
      _
    // Predicated region
    $region10: #{affinity_merge_extra_tanh.1} parent=1 // pred_check
      _
    $region11: #{affinity_merge_extra_tanh.1} parent=1 // pred_check_branch
      %20 = sbr.rel (0) target = $region13
    $region12: #{affinity_merge_extra_tanh.1} parent=1 // pred_region
      _
    $region13: #{affinity_merge_extra_tanh.1} parent=1 // pred_fallthru
      _
    // Predicated region
    $region14: #{affinity_merge_extra_tanh.1} parent=1 // pred_check
      _
    $region15: #{affinity_merge_extra_tanh.1} parent=1 // pred_check_branch
      %22 = sbr.rel (0) target = $region17
    $region16: #{affinity_merge_extra_tanh.1} parent=1 // pred_region
      _
    $region17: #{affinity_merge_extra_tanh.1} parent=1 // pred_fallthru
      _
    // Predicated region
    $region18: #{affinity_merge_extra_tanh.1} parent=1 // pred_check
      _
    $region19: #{affinity_merge_extra_tanh.1} parent=1 // pred_check_branch
      %24 = sbr.rel (0) target = $region21
    $region20: #{affinity_merge_extra_tanh.1} parent=1 // pred_region
      _
    $region21: #{affinity_merge_extra_tanh.1} parent=1 // pred_fallthru
      _
    // Predicated region
    $region22: #{affinity_merge_extra_tanh.1} parent=1 // pred_check
      _
    $region23: #{affinity_merge_extra_tanh.1} parent=1 // pred_check_branch
      %26 = sbr.rel (0) target = $region25
    $region24: #{affinity_merge_extra_tanh.1} parent=1 // pred_region
      _
    $region25: #{affinity_merge_extra_tanh.1} parent=1 // pred_fallthru
      _
    // Predicated region
    $region26: #{affinity_merge_extra_tanh.1} parent=1 // pred_check
      _
    $region27: #{affinity_merge_extra_tanh.1} parent=1 // pred_check_branch
      %28 = sbr.rel (0) target = $region29
    $region28: #{affinity_merge_extra_tanh.1} parent=1 // pred_region
      _
    $region29: #{affinity_merge_extra_tanh.1} parent=1 // pred_fallthru
      _
    // Predicated region
    $region30: #{affinity_merge_extra_tanh.1} parent=1 // pred_check
      _
    $region31: #{affinity_merge_extra_tanh.1} parent=1 // pred_check_branch
      %30 = sbr.rel (0) target = $region33
    $region32: #{affinity_merge_extra_tanh.1} parent=1 // pred_region
      _
    $region33: #{affinity_merge_extra_tanh.1} parent=1 // pred_fallthru
      _
    // Predicated region
    $region34: #{affinity_merge_extra_tanh.1} parent=1 // pred_check
      _
    $region35: #{affinity_merge_extra_tanh.1} parent=1 // pred_check_branch
      %32 = sbr.rel (0) target = $region37
    $region36: #{affinity_merge_extra_tanh.1} parent=1 // pred_region
      _
    $region37: #{affinity_merge_extra_tanh.1} parent=1 // pred_fallthru
      _
    %v34 = vld [vmem:[%s0] sm:$0xf]
    %v35 = vld [vmem:[%s2] sm:$0xf]
    %v36 = vld [vmem:[%s2 + $0x4] sm:$0xf]
    %v37 = vld [vmem:[%s1] sm:$0xf]
    %v38 = vld [vmem:[%s3] sm:$0xf]
    %v39 = vld [vmem:[%s3 + $0x4] sm:$0xf]
    %v42 = vunpack.c.l.b16 %v38
    %v43 = vunpack.c.l.b16 %v39
    %v44 = vpack.c.b16 %v43, %v42
    %vm46 = vcmask 130048
    %v48 = vsel %vm46, %v37, 0
    %50 = vmatpush.bf16.msra.mxu0 0
    %51 = vmatpush.bf16.msra.mxu0 0
    %52 = vmatpush.bf16.msra.mxu0 0
    %53 = vmatpush.bf16.msra.mxu0 0
    %54 = vmatpush.bf16.msra.mxu0 0
    %55 = vmatpush.bf16.msra.mxu0 0
    %56 = vmatpush.bf16.msra.mxu0 0
    %57 = vmatpush.bf16.msra.mxu0 %v44
    %58 = vmatmul.bf16.gmra.mxu0 %v48
    %v59 = vpop.f32.mrf.mxu0
    %v60 = vadd.f32 0.0, %v59
    %v61 = vpop.f32.mrf.mxu0
    %62 = vdwg.mxu0
    %v65 = vunpack.c.l.b16 %v35
    %v66 = vunpack.c.l.b16 %v36
    %v67 = vpack.c.b16 %v66, %v65
    %v70 = vsel %vm46, %v34, 0
    %72 = vmatpush.bf16.msra.mxu0 0
    %73 = vmatpush.bf16.msra.mxu0 0
    %74 = vmatpush.bf16.msra.mxu0 0
    %75 = vmatpush.bf16.msra.mxu0 0
    %76 = vmatpush.bf16.msra.mxu0 0
    %77 = vmatpush.bf16.msra.mxu0 0
    %78 = vmatpush.bf16.msra.mxu0 0
    %79 = vmatpush.bf16.msra.mxu0 %v67
    %80 = vmatmul.bf16.gmra.mxu0 %v70
    %v81 = vpop.f32.mrf.mxu0
    %v82 = vadd.f32 %v60, %v81
    %v83 = vpop.f32.mrf.mxu0
    %84 = vdwg.mxu0
    %v85 = vld [vmem:[%s4] sm:$0x1]
    %v87 = vperm.slane %v85, 0
    %v89 = vadd.f32 %v82, %v87
    %v90 = vtanh.pop %v89
    %v91 = vpack.c.bf16 %v90, %v90
    %v92 = vld [vmem:[%s5] sm:$0xf]
    %v93 = vld [vmem:[%s5 + $0x4] sm:$0xf]
    %v94 = vld [vmem:[%s5 + $0x8] sm:$0xf]
    %v95 = vld [vmem:[%s5 + $0xc] sm:$0xf]
    %v96 = vld [vmem:[%s5 + $0x10] sm:$0xf]
    %v97 = vld [vmem:[%s5 + $0x14] sm:$0xf]
    %v98 = vld [vmem:[%s5 + $0x18] sm:$0xf]
    %v99 = vld [vmem:[%s5 + $0x1c] sm:$0xf]
    %v100 = vld [vmem:[%s5 + $0x20] sm:$0xf]
    %v101 = vld [vmem:[%s5 + $0x24] sm:$0xf]
    %v102 = vld [vmem:[%s5 + $0x28] sm:$0xf]
    %v103 = vld [vmem:[%s5 + $0x2c] sm:$0xf]
    %v104 = vld [vmem:[%s5 + $0x30] sm:$0xf]
    %v105 = vld [vmem:[%s5 + $0x34] sm:$0xf]
    %v106 = vld [vmem:[%s5 + $0x38] sm:$0xf]
    %v107 = vld [vmem:[%s5 + $0x3c] sm:$0xf]
    %v108 = vld [vmem:[%s6] sm:$0x1]
    %v110 = vperm.slane %v108, 0
    %v128 = vunpack.c.l.b16 %v92
    %v129 = vunpack.c.l.b16 %v93
    %v130 = vunpack.c.l.b16 %v94
    %v131 = vunpack.c.l.b16 %v95
    %v132 = vunpack.c.l.b16 %v96
    %v133 = vunpack.c.l.b16 %v97
    %v134 = vunpack.c.l.b16 %v98
    %v135 = vunpack.c.l.b16 %v99
    %v136 = vunpack.c.l.b16 %v100
    %v137 = vunpack.c.l.b16 %v101
    %v138 = vunpack.c.l.b16 %v102
    %v139 = vunpack.c.l.b16 %v103
    %v140 = vunpack.c.l.b16 %v104
    %v141 = vunpack.c.l.b16 %v105
    %v142 = vunpack.c.l.b16 %v106
    %v143 = vunpack.c.l.b16 %v107
    %v144 = vpack.c.b16 %v129, %v128
    %v145 = vpack.c.b16 %v131, %v130
    %v146 = vpack.c.b16 %v133, %v132
    %v147 = vpack.c.b16 %v135, %v134
    %v148 = vpack.c.b16 %v137, %v136
    %v149 = vpack.c.b16 %v139, %v138
    %v150 = vpack.c.b16 %v141, %v140
    %v151 = vpack.c.b16 %v143, %v142
    %160 = vmatpush.bf16.msra.mxu0 %v151
    %161 = vmatpush.bf16.msra.mxu0 %v150
    %162 = vmatpush.bf16.msra.mxu0 %v149
    %163 = vmatpush.bf16.msra.mxu0 %v148
    %164 = vmatpush.bf16.msra.mxu0 %v147
    %165 = vmatpush.bf16.msra.mxu0 %v146
    %166 = vmatpush.bf16.msra.mxu0 %v145
    %167 = vmatpush.bf16.msra.mxu0 %v144
    %168 = vmatmul.bf16.gmra.mxu0 %v91
    %v169 = vpop.f32.mrf.mxu0
    %v170 = vadd.f32 %v110, %v169
    %v171 = vpop.f32.mrf.mxu0
    %172 = vdwg.mxu0
    %v173 = vmax.f32 %v170, 0.0
    %v174 = vpack.c.bf16 %v173, %v173
    %v175 = vld [vmem:[%s7] sm:$0xf]
    %v176 = vld [vmem:[%s7 + $0x4] sm:$0xf]
    %v177 = vld [vmem:[%s7 + $0x8] sm:$0xf]
    %v178 = vld [vmem:[%s7 + $0xc] sm:$0xf]
    %v179 = vld [vmem:[%s8] sm:$0x1]
    %v181 = vperm.slane %v179, 0
    %v187 = vunpack.c.l.b16 %v175
    %v188 = vunpack.c.l.b16 %v176
    %v189 = vunpack.c.l.b16 %v177
    %v190 = vunpack.c.l.b16 %v178
    %v191 = vpack.c.b16 %v188, %v187
    %v192 = vpack.c.b16 %v190, %v189
    %vm195 = vcmask 261120
    %v197 = vsel %vm195, %v174, 0
    %199 = vmatpush.bf16.msra.mxu0 0
    %200 = vmatpush.bf16.msra.mxu0 0
    %201 = vmatpush.bf16.msra.mxu0 0
    %202 = vmatpush.bf16.msra.mxu0 0
    %203 = vmatpush.bf16.msra.mxu0 0
    %204 = vmatpush.bf16.msra.mxu0 0
    %205 = vmatpush.bf16.msra.mxu0 %v192
    %206 = vmatpush.bf16.msra.mxu0 %v191
    %207 = vmatmul.bf16.gmra.mxu0 %v197
    %v208 = vpop.f32.mrf.mxu0
    %v209 = vadd.f32 %v181, %v208
    %v210 = vpop.f32.mrf.mxu0
    %211 = vdwg.mxu0
    %212 = vst [vmem:[#allocation2] sm:$0xff] %v209
    // Predicated region
    $region38: #{affinity_merge_extra_tanh.1} parent=1 // pred_check
      _
    $region39: #{affinity_merge_extra_tanh.1} parent=1 // pred_check_branch
      %214 = sbr.rel (0) target = $region41
    $region40: #{affinity_merge_extra_tanh.1} parent=1 // pred_region
      %216 = vsyncadd [#allocation3], 0
      %s218 = sshll.u32 [#allocation2], 4
      %s219 = int_to_ptr.vmem [resolvable:$true] %s218
      %s220 = sshll.u32 %s9, 4
      %s221 = int_to_ptr.hbm [resolvable:$true] %s220
      %223 = dma.vmem_to_hbm [thread:$0]  %s219, 128, %s221, [#allocation3]
    $region41: #{affinity_merge_extra_tanh.1} parent=1 // pred_fallthru
      _
    // Predicated region
    $region42: #{affinity_merge_extra_tanh.1} parent=1 // pred_check
      _
    $region43: #{affinity_merge_extra_tanh.1} parent=1 // pred_check_branch
      %225 = sbr.rel (0) target = $region45
    $region44: #{affinity_merge_extra_tanh.1} parent=1 // pred_region
      %227 = dma.done [#allocation3], 128
    $region45: #{affinity_merge_extra_tanh.1} parent=1 // pred_fallthru
      _
    %228 = vsyncpa [#allocation3], 1

</llo_original>
